<compile_context>
chip_gen: v7x
topology: tpu7x:2x2x1
jax: 0.10.0
libtpu: 0.0.40
codegen_flags: <defaults>
</compile_context>

<pallas_src>
import functools

import jax
import jax.numpy as jnp
from jax.experimental import pallas as pl
from jax.experimental.pallas import tpu as pltpu


def _round_up(x, m):
    return ((x + m - 1) // m) * m


def _vmem_capacity_bytes():
    """Per-core VMEM capacity; falls back to 128 MiB if the query fails."""
    try:
        info = pltpu.get_tpu_info()
        cap = getattr(info, "vmem_capacity_bytes", None)
        if cap:
            return int(cap)
    except Exception:
        pass
    return 128 * 1024 * 1024


def _device_kind():
    try:
        return jax.devices()[0].device_kind.lower()
    except Exception:
        return ""


# --------------------------------------------------------------------------
# Kernels
# --------------------------------------------------------------------------
def _mlp_kernel_acc_out(x_ref, w1_ref, b1_ref, w2_ref, b2_ref, o_ref):
    """f32 output: accumulate directly into the output block (resident over hk)."""
    hk = pl.program_id(1)

    @pl.when(hk == 0)
    def _init():
        # Fold b2 into the accumulator init (one sublane broadcast per row tile).
        o_ref[...] = jnp.broadcast_to(b2_ref[...], o_ref.shape)

    # First matmul chunk on the MXU, f32 accumulation.
    h = jnp.dot(x_ref[...], w1_ref[...], preferred_element_type=jnp.float32)
    # Bias + ReLU in f32 on the VPU.  dropout(p=0.1) in eval mode == identity.
    h = jnp.maximum(h + b1_ref[...], 0.0)
    # Second matmul chunk, accumulated in f32 directly in the output block.
    o_ref[...] += jnp.dot(h.astype(w2_ref.dtype), w2_ref[...],
                          preferred_element_type=jnp.float32)


def _mlp_kernel_scratch(x_ref, w1_ref, b1_ref, w2_ref, b2_ref, o_ref, acc_ref):
    """Sub-32-bit output: f32 VMEM scratch accumulator, cast/store at last hk."""
    hk = pl.program_id(1)

    @pl.when(hk == 0)
    def _init():
        acc_ref[...] = jnp.broadcast_to(b2_ref[...], acc_ref.shape)

    h = jnp.dot(x_ref[...], w1_ref[...], preferred_element_type=jnp.float32)
    h = jnp.maximum(h + b1_ref[...], 0.0)
    acc_ref[...] += jnp.dot(h.astype(w2_ref.dtype), w2_ref[...],
                            preferred_element_type=jnp.float32)

    @pl.when(hk == pl.num_programs(1) - 1)
    def _store():
        o_ref[...] = acc_ref[...].astype(o_ref.dtype)


# --------------------------------------------------------------------------
# pallas_call wrapper (jitted, static tiling)
# --------------------------------------------------------------------------
@functools.partial(jax.jit,
                   static_argnames=("tm", "tile_h", "compute_dtype", "vmem_cap"))
def _mlp_forward_impl(x2d, w1, b1, w2, b2, *, tm, tile_h, compute_dtype, vmem_cap):
    n_rows, d_model = x2d.shape
    d_hidden = w1.shape[1]
    out_dtype = x2d.dtype

    if compute_dtype is not None:
        cdt = jnp.dtype(compute_dtype)
        x2d = x2d.astype(cdt)
        w1 = w1.astype(cdt)
        w2 = w2.astype(cdt)
    # Biases participate in f32 accumulation regardless of compute dtype.
    b1_2d = b1.reshape(1, d_hidden).astype(jnp.float32)
    b2_2d = b2.reshape(1, d_model).astype(jnp.float32)

    n_row_tiles = pl.cdiv(n_rows, tm)           # ragged last tile masked by Pallas
    n_hid_tiles = d_hidden // tile_h
    grid = (n_row_tiles, n_hid_tiles)

    in_bytes = jnp.dtype(x2d.dtype).itemsize
    out_bytes = jnp.dtype(out_dtype).itemsize

    # f32 output -> accumulate directly into the resident output block.
    acc_in_out = jnp.dtype(out_dtype) == jnp.dtype(jnp.float32)

    # VMEM estimate: double-buffered tiles + h chunk (+ scratch acc if needed).
    est = 2 * (tm * d_model * in_bytes           # x tile
               + tm * d_model * out_bytes        # out tile
               + d_model * tile_h * in_bytes     # W1 chunk
               + tile_h * d_model * in_bytes     # W2 chunk
               + tile_h * 4 + d_model * 4)       # bias tiles
    est += tm * tile_h * (4 + in_bytes)          # f32 h chunk + cast copy
    if not acc_in_out:
        est += tm * d_model * 4                  # scratch accumulator
    vmem_limit = int(min(max(32 * 1024 * 1024, est * 5 // 4),
                         vmem_cap * 7 // 8))     # gen-aware cap with headroom

    # When tile_h == d_hidden the weight index_maps are grid-invariant and the
    # weights are fetched from HBM exactly once; otherwise once per row tile.
    weight_reads = 1 if n_hid_tiles == 1 else n_row_tiles
    cost = pl.CostEstimate(
        flops=4 * n_rows * d_model * d_hidden,   # two matmuls, 2 flops / MAC
        transcendentals=0,
        bytes_accessed=(n_rows * d_model * (in_bytes + out_bytes)
                        + weight_reads * 2 * d_model * d_hidden * in_bytes
                        + 4 * (d_hidden + d_model)),
    )

    in_specs = [
        pl.BlockSpec((tm, d_model), lambda i, hk: (i, 0)),       # x row tile (resident over hk)
        pl.BlockSpec((d_model, tile_h), lambda i, hk: (0, hk)),  # W1 chunk
        pl.BlockSpec((1, tile_h), lambda i, hk: (0, hk)),        # b1 chunk
        pl.BlockSpec((tile_h, d_model), lambda i, hk: (hk, 0)),  # W2 chunk
        pl.BlockSpec((1, d_model), lambda i, hk: (0, 0)),        # b2
    ]
    out_spec = pl.BlockSpec((tm, d_model), lambda i, hk: (i, 0))

    kernel = _mlp_kernel_acc_out if acc_in_out else _mlp_kernel_scratch
    scratch = [] if acc_in_out else [pltpu.VMEM((tm, d_model), jnp.float32)]

    return pl.pallas_call(
        kernel,
        out_shape=jax.ShapeDtypeStruct((n_rows, d_model), out_dtype),
        grid_spec=pltpu.PrefetchScalarGridSpec(
            num_scalar_prefetch=0,
            grid=grid,
            in_specs=in_specs,
            out_specs=out_spec,
            scratch_shapes=scratch,
        ),
        compiler_params=pltpu.CompilerParams(
            dimension_semantics=("parallel", "arbitrary"),
            vmem_limit_bytes=vmem_limit,
        ),
        cost_estimate=cost,
    )(x2d, w1, b1_2d, w2, b2_2d)


# --------------------------------------------------------------------------
# Public API
# --------------------------------------------------------------------------
def mlp_forward(x, w1, b1, w2, b2, *, tm=None, tile_h=None,
                compute_dtype=jnp.bfloat16):
    """Fused MLP forward: relu(x @ W1 + b1) @ W2 + b2 (eval-mode dropout = identity).

    x: (..., d_model); W1: (d_model, d_hidden); W2: (d_hidden, d_model).
    Returns the same shape / dtype as x.  compute_dtype=bfloat16 (default) runs
    the MXUs natively and halves the weight stream; f32 accumulation and f32
    bias/ReLU math are kept either way.  Pass compute_dtype=None or jnp.float32
    for full f32 compute.
    """
    orig_shape = x.shape
    d_model = orig_shape[-1]
    d_hidden = w1.shape[1]
    x2d = x.reshape(-1, d_model)
    n_rows = x2d.shape[0]

    cdt = jnp.dtype(compute_dtype) if compute_dtype is not None else jnp.dtype(x.dtype)
    w_bytes = cdt.itemsize
    out_bytes = jnp.dtype(x.dtype).itemsize
    row_align = 16 if w_bytes < 4 else 8         # sublane packing for sub-32-bit

    vmem_cap = _vmem_capacity_bytes()
    kind = _device_kind()
    is_v7x = ("v7" in kind) or (vmem_cap <= 96 * 1024 * 1024)
    budget = vmem_cap * 6 // 10                  # headroom for compiler scratch

    def _weights_buf_bytes(th):                  # W1+W2 chunks, double-buffered
        return 2 * 2 * d_model * th * w_bytes

    # ---- hidden tile: prefer full weight residency (fetched from HBM once) ----
    if tile_h is None:
        if _weights_buf_bytes(d_hidden) <= budget // 2:
            tile_h = d_hidden
        else:
            tile_h = d_hidden
            for cand in (1024, 512, 256, 128):
                if d_hidden % cand == 0 and _weights_buf_bytes(cand) <= budget // 2:
                    tile_h = cand
                    break
    tile_h = int(tile_h)
    if tile_h != d_hidden and (d_hidden % tile_h != 0 or tile_h % 128 != 0):
        raise ValueError(
            f"tile_h={tile_h} must be a multiple of 128 that divides d_hidden={d_hidden}")
    resident = (tile_h == d_hidden)

    # ---- row tile ----
    if tm is None:
        if resident:
            tm = 256
        elif is_v7x or ("v5" in kind):
            tm = 256
        else:                                    # v6e streamed weights: amortize the stream
            tm = 512

        def _est(t):
            e = 2 * (t * d_model * w_bytes + t * d_model * out_bytes)
            e += _weights_buf_bytes(tile_h)
            e += 2 * (tile_h + d_model) * 4
            e += t * tile_h * (4 + w_bytes)
            e += t * d_model * 4
            return e

        while tm > row_align and _est(tm) > budget:
            tm //= 2
    tm = int(max(row_align, _round_up(tm, row_align)))
    tm = min(tm, _round_up(n_rows, row_align))   # never bigger than the row count

    # Small inputs: guarantee >= 2 row tiles when cheap (v7x megacore, or when
    # weights are resident so splitting adds no weight re-streaming).
    if (is_v7x or resident) and pl.cdiv(n_rows, tm) == 1:
        half = _round_up(pl.cdiv(n_rows, 2), row_align)
        if half < n_rows:
            tm = half

    cd_name = None if compute_dtype is None else jnp.dtype(compute_dtype).name
    out2d = _mlp_forward_impl(x2d, w1, b1, w2, b2,
                              tm=tm, tile_h=tile_h,
                              compute_dtype=cd_name, vmem_cap=vmem_cap)
    return out2d.reshape(orig_shape)


def init_mlp_params(key, d_model, dtype=jnp.float32):
    """Deterministic init mimicking torch.nn.Linear default (U[-1/sqrt(fan_in), +])."""
    d_hidden = 2 * d_model
    k1, k2, k3, k4 = jax.random.split(key, 4)
    bound1 = 1.0 / (d_model ** 0.5)
    bound2 = 1.0 / (d_hidden ** 0.5)
    # stored as (in, out) so the kernel computes x @ W + b  (== torch x @ W^T + b)
    w1 = jax.random.uniform(k1, (d_model, d_hidden), dtype, -bound1, bound1)
    b1 = jax.random.uniform(k2, (d_hidden,), dtype, -bound1, bound1)
    w2 = jax.random.uniform(k3, (d_hidden, d_model), dtype, -bound2, bound2)
    b2 = jax.random.uniform(k4, (d_model,), dtype, -bound2, bound2)
    return w1, b1, w2, b2


if __name__ == "__main__":
    key = jax.random.PRNGKey(0)
    kx, kp, kx2 = jax.random.split(key, 3)

    batch, seq, d_model = 2, 8, 128  # lane-dense feature dim (multiple of 128)
    x = jax.random.normal(kx, (batch, seq, d_model), jnp.float32)
    w1, b1, w2, b2 = init_mlp_params(kp, d_model)

    # pure-JAX reference (eval-mode dropout == identity)
    ref = jnp.maximum(x @ w1 + b1, 0.0) @ w2 + b2

    # Default path: bf16 compute, f32 accumulation, resident weights.
    y = jax.block_until_ready(mlp_forward(x, w1, b1, w2, b2))
    assert y.shape == x.shape and y.dtype == x.dtype
    assert jnp.allclose(y, ref, atol=5e-2, rtol=5e-2), "bf16-default mismatch vs reference"

    # f32 compute path with streamed hidden tiles (exercises hk accumulation
    # directly in the f32 output block) — tight tolerance.
    y_f32 = jax.block_until_ready(
        mlp_forward(x, w1, b1, w2, b2, tile_h=128, compute_dtype=jnp.float32))
    assert jnp.allclose(y_f32, ref, atol=1e-5, rtol=1e-5), "f32 mismatch vs reference"

    # bf16 *output* path (scratch accumulator kernel) with streamed hidden tiles.
    x_bf = x.astype(jnp.bfloat16)
    ref_bf = jnp.maximum(x_bf.astype(jnp.float32) @ w1 + b1, 0.0) @ w2 + b2
    y_bf = jax.block_until_ready(mlp_forward(x_bf, w1, b1, w2, b2, tile_h=128))
    assert y_bf.dtype == jnp.bfloat16 and y_bf.shape == x.shape
    assert jnp.allclose(y_bf.astype(jnp.float32), ref_bf, atol=5e-2, rtol=5e-2), \
        "bf16-output mismatch vs reference"

    # Ragged row count (3*5 = 15 rows) exercises the masked last-row-tile path
    # (no wrapper-side pad/slice anymore).
    x2 = jax.random.normal(kx2, (3, 5, d_model), jnp.float32)
    ref2 = jnp.maximum(x2 @ w1 + b1, 0.0) @ w2 + b2
    y2 = jax.block_until_ready(mlp_forward(x2, w1, b1, w2, b2, compute_dtype=jnp.float32))
    assert jnp.allclose(y2, ref2, atol=1e-5, rtol=1e-5), "ragged-rows mismatch"

    print("KERNEL_OK")
</pallas_src>

<mosaic_0001>
module attributes {stable_mosaic.version = 11 : i64} {
  func.func @_mlp_kernel_acc_out(%arg0: i32, %arg1: i32, %arg2: memref<16x128xbf16, #tpu.memory_space<vmem>>, %arg3: memref<128x256xbf16, #tpu.memory_space<vmem>>, %arg4: memref<1x256xf32, #tpu.memory_space<vmem>>, %arg5: memref<256x128xbf16, #tpu.memory_space<vmem>>, %arg6: memref<1x128xf32, #tpu.memory_space<vmem>>, %arg7: memref<16x128xf32, #tpu.memory_space<vmem>>) attributes {dimension_semantics = [#tpu.dimension_semantics<parallel>, #tpu.dimension_semantics<arbitrary>], iteration_bounds = array<i64: 1, 1>, scalar_prefetch = 0 : i64, scratch_operands = 0 : i64, tpu.core_type = #tpu.core_type<tc>, window_params = [{transform_indices = @transform_0, window_bounds = array<i64: 16, 128>}, {transform_indices = @transform_1, window_bounds = array<i64: 128, 256>}, {transform_indices = @transform_2, window_bounds = array<i64: 1, 256>}, {transform_indices = @transform_3, window_bounds = array<i64: 256, 128>}, {pipeline_mode = #tpu.pipeline_mode<synchronous>, transform_indices = @transform_4, window_bounds = array<i64: 1, 128>}, {transform_indices = @transform_5, window_bounds = array<i64: 16, 128>}]} {
    %c0_i32 = arith.constant 0 : i32
    %0 = arith.cmpi eq, %arg1, %c0_i32 : i32
    %1 = arith.extui %0 : i1 to i32
    %c0_i32_0 = arith.constant 0 : i32
    %2 = arith.cmpi ne, %1, %c0_i32_0 : i32
    scf.if %2 {
      %c0_14 = arith.constant 0 : index
      %c0_15 = arith.constant 0 : index
      %17 = vector.load %arg6[%c0_14, %c0_15] : memref<1x128xf32, #tpu.memory_space<vmem>>, vector<1x128xf32>
      %18 = vector.shape_cast %17 : vector<1x128xf32> to vector<1x128xf32>
      %19 = vector.broadcast %18 : vector<1x128xf32> to vector<16x128xf32>
      %c0_16 = arith.constant 0 : index
      %c0_17 = arith.constant 0 : index
      %20 = vector.load %arg7[%c0_16, %c0_17] : memref<16x128xf32, #tpu.memory_space<vmem>>, vector<16x128xf32>
      tpu.vector_store %arg7[%c0_16, %c0_17], %19 {strides = array<i32>} : memref<16x128xf32, #tpu.memory_space<vmem>>, vector<16x128xf32>,
    } else {
    }
    %c0 = arith.constant 0 : index
    %c0_1 = arith.constant 0 : index
    %3 = vector.load %arg2[%c0, %c0_1] : memref<16x128xbf16, #tpu.memory_space<vmem>>, vector<16x128xbf16>
    %c0_2 = arith.constant 0 : index
    %c0_3 = arith.constant 0 : index
    %4 = vector.load %arg3[%c0_2, %c0_3] : memref<128x256xbf16, #tpu.memory_space<vmem>>, vector<128x256xbf16>
    %cst = arith.constant dense<0.000000e+00> : vector<16x256xf32>
    %5 = tpu.matmul %3, %4, %cst {dimension_numbers = #tpu.dot_dimension_numbers<[1], [0], [0], [1], [0, 0, 1, 1], [], []>} : vector<16x128xbf16>, vector<128x256xbf16>, vector<16x256xf32> -> vector<16x256xf32>
    %c0_4 = arith.constant 0 : index
    %c0_5 = arith.constant 0 : index
    %6 = vector.load %arg4[%c0_4, %c0_5] : memref<1x256xf32, #tpu.memory_space<vmem>>, vector<1x256xf32>
    %7 = vector.broadcast %6 : vector<1x256xf32> to vector<16x256xf32>
    %8 = arith.addf %5, %7 : vector<16x256xf32>
    %cst_6 = arith.constant 0.000000e+00 : f32
    %9 = vector.broadcast %cst_6 : f32 to vector<16x256xf32>
    %10 = arith.maximumf %8, %9 : vector<16x256xf32>
    %c0_7 = arith.constant 0 : index
    %c0_8 = arith.constant 0 : index
    %11 = vector.load %arg7[%c0_7, %c0_8] : memref<16x128xf32, #tpu.memory_space<vmem>>, vector<16x128xf32>
    %12 = arith.truncf %10 : vector<16x256xf32> to vector<16x256xbf16>
    %c0_9 = arith.constant 0 : index
    %c0_10 = arith.constant 0 : index
    %13 = vector.load %arg5[%c0_9, %c0_10] : memref<256x128xbf16, #tpu.memory_space<vmem>>, vector<256x128xbf16>
    %cst_11 = arith.constant dense<0.000000e+00> : vector<16x128xf32>
    %14 = tpu.matmul %12, %13, %cst_11 {dimension_numbers = #tpu.dot_dimension_numbers<[1], [0], [0], [1], [0, 0, 1, 1], [], []>} : vector<16x256xbf16>, vector<256x128xbf16>, vector<16x128xf32> -> vector<16x128xf32>
    %15 = arith.addf %11, %14 : vector<16x128xf32>
    %c0_12 = arith.constant 0 : index
    %c0_13 = arith.constant 0 : index
    %16 = vector.load %arg7[%c0_12, %c0_13] : memref<16x128xf32, #tpu.memory_space<vmem>>, vector<16x128xf32>
    tpu.vector_store %arg7[%c0_12, %c0_13], %15 {strides = array<i32>} : memref<16x128xf32, #tpu.memory_space<vmem>>, vector<16x128xf32>,
    return
  }
  func.func @transform_0(%arg0: i32, %arg1: i32) -> (i32, i32) {
    %c0_i32 = arith.constant 0 : i32
    %c0_i32_0 = arith.constant 0 : i32
    return %arg0, %c0_i32 : i32, i32
  }
  func.func @transform_1(%arg0: i32, %arg1: i32) -> (i32, i32) {
    %c0_i32 = arith.constant 0 : i32
    %c0_i32_0 = arith.constant 0 : i32
    return %c0_i32, %arg1 : i32, i32
  }
  func.func @transform_2(%arg0: i32, %arg1: i32) -> (i32, i32) {
    %c0_i32 = arith.constant 0 : i32
    %c0_i32_0 = arith.constant 0 : i32
    return %c0_i32, %arg1 : i32, i32
  }
  func.func @transform_3(%arg0: i32, %arg1: i32) -> (i32, i32) {
    %c0_i32 = arith.constant 0 : i32
    %c0_i32_0 = arith.constant 0 : i32
    return %arg1, %c0_i32 : i32, i32
  }
  func.func @transform_4(%arg0: i32, %arg1: i32) -> (i32, i32) {
    %c0_i32 = arith.constant 0 : i32
    %c0_i32_0 = arith.constant 0 : i32
    %c0_i32_1 = arith.constant 0 : i32
    return %c0_i32, %c0_i32_0 : i32, i32
  }
  func.func @transform_5(%arg0: i32, %arg1: i32) -> (i32, i32) {
    %c0_i32 = arith.constant 0 : i32
    %c0_i32_0 = arith.constant 0 : i32
    return %arg0, %c0_i32 : i32, i32
  }
}

</mosaic_0001>

<llo_original>
// kernel: _mlp_forward_impl.1
$region0: #{_mlp_forward_impl.1}
  #allocation0 [shape = 'u32[]', space=smem, size = 0x4, offset = 0x4, fixed_abs, tag = 'smem constant byte address 0x4 - core index']
  #allocation1 [shape = 'u32[144,128]{1,0:T(1,128)}', space=vmem, size = 0x12000, scoped, tag = 'internal scratch']
  %s0 = inlined_call_operand.vmem [shape: bf16[16,128], index: 0, kind: input, shape index: {}]
  %s1 = inlined_call_operand.vmem [shape: bf16[128,256], index: 1, kind: input, shape index: {}]
  %s2 = inlined_call_operand.vmem [shape: f32[1,256], index: 2, kind: input, shape index: {}]
  %s3 = inlined_call_operand.vmem [shape: bf16[256,128], index: 3, kind: input, shape index: {}]
  %s4 = inlined_call_operand.vmem [shape: f32[1,128], index: 4, kind: input, shape index: {}]
  %s5 = inlined_call_operand.hbm [shape: f32[16,128], index: 5, kind: output, shape index: {}]
  %s6 = sld [smem:[#allocation0]]
  $region34: #{_mlp_forward_impl.1} parent=0
    _
  %s8 = ssub.s32 1, %s6
  %s9 = scalar_select 0, %s8, %s6
  $region1: #{_mlp_forward_impl.1} parent=0
    #allocation2 [shape = 'u8[8192]{0}', space=vmem, size = 0x2000, scoped, tag = 'output window, operand 0, single buffered']
    #allocation3 [shape = 's32[1]{0}', space=sflag, size = 0x4, scoped, tag = 'scoped memory for _mlp_forward_impl.1']
    %10 = vsyncpa [#allocation3], 0
    // Predicated region
    $region2: #{_mlp_forward_impl.1} parent=1 // pred_check
      _
    $region3: #{_mlp_forward_impl.1} parent=1 // pred_check_branch
      %12 = sbr.rel (0) target = $region5
    $region4: #{_mlp_forward_impl.1} parent=1 // pred_region
      _
    $region5: #{_mlp_forward_impl.1} parent=1 // pred_fallthru
      _
    // Predicated region
    $region6: #{_mlp_forward_impl.1} parent=1 // pred_check
      _
    $region7: #{_mlp_forward_impl.1} parent=1 // pred_check_branch
      %14 = sbr.rel (0) target = $region9
    $region8: #{_mlp_forward_impl.1} parent=1 // pred_region
      _
    $region9: #{_mlp_forward_impl.1} parent=1 // pred_fallthru
      _
    // Predicated region
    $region10: #{_mlp_forward_impl.1} parent=1 // pred_check
      _
    $region11: #{_mlp_forward_impl.1} parent=1 // pred_check_branch
      %16 = sbr.rel (0) target = $region13
    $region12: #{_mlp_forward_impl.1} parent=1 // pred_region
      _
    $region13: #{_mlp_forward_impl.1} parent=1 // pred_fallthru
      _
    // Predicated region
    $region14: #{_mlp_forward_impl.1} parent=1 // pred_check
      _
    $region15: #{_mlp_forward_impl.1} parent=1 // pred_check_branch
      %18 = sbr.rel (0) target = $region17
    $region16: #{_mlp_forward_impl.1} parent=1 // pred_region
      _
    $region17: #{_mlp_forward_impl.1} parent=1 // pred_fallthru
      _
    // Predicated region
    $region18: #{_mlp_forward_impl.1} parent=1 // pred_check
      _
    $region19: #{_mlp_forward_impl.1} parent=1 // pred_check_branch
      %20 = sbr.rel (0) target = $region21
    $region20: #{_mlp_forward_impl.1} parent=1 // pred_region
      _
    $region21: #{_mlp_forward_impl.1} parent=1 // pred_fallthru
      _
    %p22 = scmp.eq.s32.totalorder 0, 0
    // Predicated region
    $region22: #{_mlp_forward_impl.1} parent=1 // pred_check
      %p23 = pneg %p22
    $region23: #{_mlp_forward_impl.1} parent=1 // pred_check_branch
      %25 = sbr.rel (%p23) target = $region25
    $region24: #{_mlp_forward_impl.1} parent=1 // pred_region
      %v26 = vld [vmem:[%s4] sm:$0x1]
      %v28 = vlaneseq
      %v29 = vshrl.u32 %v28, 7
      %v30 = vsub.s32 0, %v29
      %v31 = vrot.slane %v26, %v30
      %33 = vst [vmem:[#allocation2] sm:$0xff] %v31
      %34 = vst [vmem:[#allocation2 + $0x8] sm:$0xff] %v31
    $region25: #{_mlp_forward_impl.1} parent=1 // pred_fallthru
      _
    %v35 = vld [vmem:[%s0] sm:$0xf]
    %v36 = vld [vmem:[%s0 + $0x4] sm:$0xf]
    %v37 = vld [vmem:[%s1] sm:$0xff]
    %v38 = vld [vmem:[%s1 + $0x8] sm:$0xff]
    %v39 = vld [vmem:[%s1 + $0x10] sm:$0xff]
    %v40 = vld [vmem:[%s1 + $0x18] sm:$0xff]
    %v41 = vld [vmem:[%s1 + $0x20] sm:$0xff]
    %v42 = vld [vmem:[%s1 + $0x28] sm:$0xff]
    %v43 = vld [vmem:[%s1 + $0x30] sm:$0xff]
    %v44 = vld [vmem:[%s1 + $0x38] sm:$0xff]
    %v45 = vld [vmem:[%s1 + $0x40] sm:$0xff]
    %v46 = vld [vmem:[%s1 + $0x48] sm:$0xff]
    %v47 = vld [vmem:[%s1 + $0x50] sm:$0xff]
    %v48 = vld [vmem:[%s1 + $0x58] sm:$0xff]
    %v49 = vld [vmem:[%s1 + $0x60] sm:$0xff]
    %v50 = vld [vmem:[%s1 + $0x68] sm:$0xff]
    %v51 = vld [vmem:[%s1 + $0x70] sm:$0xff]
    %v52 = vld [vmem:[%s1 + $0x78] sm:$0xff]
    %v53 = vld [vmem:[%s2] sm:$0x3]
    %v55 = vlaneseq
    %v56 = vshrl.u32 %v55, 7
    %v57 = vsub.s32 0, %v56
    %v58 = vrot.slane %v53, %v57
    %v59 = vlaneseq
    %v60 = vshrl.u32 %v59, 7
    %v61 = vsub.s32 1, %v60
    %v62 = vrot.slane %v53, %v61
    %v67 = vunpack.c.l.b16 %v35
    %v68 = vunpack.c.l.b16 %v36
    %v69 = vpack.c.b16 %v68, %v67
    %v87 = vunpack.c.l.b16 %v37
    %v88 = vunpack.c.h.b16 %v37
    %v89 = vunpack.c.l.b16 %v38
    %v90 = vunpack.c.h.b16 %v38
    %v91 = vunpack.c.l.b16 %v39
    %v92 = vunpack.c.h.b16 %v39
    %v93 = vunpack.c.l.b16 %v40
    %v94 = vunpack.c.h.b16 %v40
    %v95 = vunpack.c.l.b16 %v41
    %v96 = vunpack.c.h.b16 %v41
    %v97 = vunpack.c.l.b16 %v42
    %v98 = vunpack.c.h.b16 %v42
    %v99 = vunpack.c.l.b16 %v43
    %v100 = vunpack.c.h.b16 %v43
    %v101 = vunpack.c.l.b16 %v44
    %v102 = vunpack.c.h.b16 %v44
    %v103 = vunpack.c.l.b16 %v45
    %v104 = vunpack.c.h.b16 %v45
    %v105 = vunpack.c.l.b16 %v46
    %v106 = vunpack.c.h.b16 %v46
    %v107 = vunpack.c.l.b16 %v47
    %v108 = vunpack.c.h.b16 %v47
    %v109 = vunpack.c.l.b16 %v48
    %v110 = vunpack.c.h.b16 %v48
    %v111 = vunpack.c.l.b16 %v49
    %v112 = vunpack.c.h.b16 %v49
    %v113 = vunpack.c.l.b16 %v50
    %v114 = vunpack.c.h.b16 %v50
    %v115 = vunpack.c.l.b16 %v51
    %v116 = vunpack.c.h.b16 %v51
    %v117 = vunpack.c.l.b16 %v52
    %v118 = vunpack.c.h.b16 %v52
    %v119 = vpack.c.b16 %v89, %v87
    %v120 = vpack.c.b16 %v90, %v88
    %v121 = vpack.c.b16 %v93, %v91
    %v122 = vpack.c.b16 %v94, %v92
    %v123 = vpack.c.b16 %v97, %v95
    %v124 = vpack.c.b16 %v98, %v96
    %v125 = vpack.c.b16 %v101, %v99
    %v126 = vpack.c.b16 %v102, %v100
    %v127 = vpack.c.b16 %v105, %v103
    %v128 = vpack.c.b16 %v106, %v104
    %v129 = vpack.c.b16 %v109, %v107
    %v130 = vpack.c.b16 %v110, %v108
    %v131 = vpack.c.b16 %v113, %v111
    %v132 = vpack.c.b16 %v114, %v112
    %v133 = vpack.c.b16 %v117, %v115
    %v134 = vpack.c.b16 %v118, %v116
    %151 = vmatprep.subr.bf16.mxu0 %v120
    %152 = vmatpush1.bf16.msra.mxu0 %v119
    %153 = vmatprep.subr.bf16.mxu0 %v122
    %154 = vmatpush1.bf16.msra.mxu0 %v121
    %155 = vmatprep.subr.bf16.mxu0 %v124
    %156 = vmatpush1.bf16.msra.mxu0 %v123
    %157 = vmatprep.subr.bf16.mxu0 %v126
    %158 = vmatpush1.bf16.msra.mxu0 %v125
    %159 = vmatprep.subr.bf16.mxu0 %v128
    %160 = vmatpush1.bf16.msra.mxu0 %v127
    %161 = vmatprep.subr.bf16.mxu0 %v130
    %162 = vmatpush1.bf16.msra.mxu0 %v129
    %163 = vmatprep.subr.bf16.mxu0 %v132
    %164 = vmatpush1.bf16.msra.mxu0 %v131
    %165 = vmatprep.subr.bf16.mxu0 %v134
    %166 = vmatpush1.bf16.msra.mxu0 %v133
    %167 = vmatprep.subr.bf16.mxu0 0
    %168 = vmatpush1.bf16.msra.mxu0 0
    %169 = vmatprep.subr.bf16.mxu0 0
    %170 = vmatpush1.bf16.msra.mxu0 0
    %171 = vmatprep.subr.bf16.mxu0 0
    %172 = vmatpush1.bf16.msra.mxu0 0
    %173 = vmatprep.subr.bf16.mxu0 0
    %174 = vmatpush1.bf16.msra.mxu0 0
    %175 = vmatprep.subr.bf16.mxu0 0
    %176 = vmatpush1.bf16.msra.mxu0 0
    %177 = vmatprep.subr.bf16.mxu0 0
    %178 = vmatpush1.bf16.msra.mxu0 0
    %179 = vmatprep.subr.bf16.mxu0 0
    %180 = vmatpush1.bf16.msra.mxu0 0
    %181 = vmatprep.subr.bf16.mxu0 0
    %182 = vmatpush1.bf16.msra.mxu0 0
    %183 = vmatprep.mubr.bf16.mxu0 0
    %184 = vmatmul.mubr.bf16.gmra.mrb[0].mxu0 %v69
    %v185 = vpop.f32.mrb[0].mxu0
    %v186 = vadd.f32 %v58, %v185
    %v187 = vpop.f32.mrb[0].mxu0
    %v188 = vadd.f32 %v62, %v187
    %v189 = vpop.f32.mrb[0].mxu0
    %v190 = vadd.f32 %v58, %v189
    %v191 = vpop.f32.mrb[0].mxu0
    %v192 = vadd.f32 %v62, %v191
    %193 = vdwg.mxu0
    %v194 = vmax.f32 %v186, 0.0
    %v195 = vmax.f32 %v188, 0.0
    %v196 = vmax.f32 %v190, 0.0
    %v197 = vmax.f32 %v192, 0.0
    %v198 = vld [vmem:[#allocation2] sm:$0xff]
    %v199 = vld [vmem:[#allocation2 + $0x8] sm:$0xff]
    %v200 = vpack.c.bf16 %v196, %v194
    %v201 = vpack.c.bf16 %v197, %v195
    %v202 = vld [vmem:[%s3] sm:$0xf]
    %v203 = vld [vmem:[%s3 + $0x4] sm:$0xf]
    %v204 = vld [vmem:[%s3 + $0x8] sm:$0xf]
    %v205 = vld [vmem:[%s3 + $0xc] sm:$0xf]
    %v206 = vld [vmem:[%s3 + $0x10] sm:$0xf]
    %v207 = vld [vmem:[%s3 + $0x14] sm:$0xf]
    %v208 = vld [vmem:[%s3 + $0x18] sm:$0xf]
    %v209 = vld [vmem:[%s3 + $0x1c] sm:$0xf]
    %v210 = vld [vmem:[%s3 + $0x20] sm:$0xf]
    %v211 = vld [vmem:[%s3 + $0x24] sm:$0xf]
    %v212 = vld [vmem:[%s3 + $0x28] sm:$0xf]
    %v213 = vld [vmem:[%s3 + $0x2c] sm:$0xf]
    %v214 = vld [vmem:[%s3 + $0x30] sm:$0xf]
    %v215 = vld [vmem:[%s3 + $0x34] sm:$0xf]
    %v216 = vld [vmem:[%s3 + $0x38] sm:$0xf]
    %v217 = vld [vmem:[%s3 + $0x3c] sm:$0xf]
    %v218 = vld [vmem:[%s3 + $0x40] sm:$0xf]
    %v219 = vld [vmem:[%s3 + $0x44] sm:$0xf]
    %v220 = vld [vmem:[%s3 + $0x48] sm:$0xf]
    %v221 = vld [vmem:[%s3 + $0x4c] sm:$0xf]
    %v222 = vld [vmem:[%s3 + $0x50] sm:$0xf]
    %v223 = vld [vmem:[%s3 + $0x54] sm:$0xf]
    %v224 = vld [vmem:[%s3 + $0x58] sm:$0xf]
    %v225 = vld [vmem:[%s3 + $0x5c] sm:$0xf]
    %v226 = vld [vmem:[%s3 + $0x60] sm:$0xf]
    %v227 = vld [vmem:[%s3 + $0x64] sm:$0xf]
    %v228 = vld [vmem:[%s3 + $0x68] sm:$0xf]
    %v229 = vld [vmem:[%s3 + $0x6c] sm:$0xf]
    %v230 = vld [vmem:[%s3 + $0x70] sm:$0xf]
    %v231 = vld [vmem:[%s3 + $0x74] sm:$0xf]
    %v232 = vld [vmem:[%s3 + $0x78] sm:$0xf]
    %v233 = vld [vmem:[%s3 + $0x7c] sm:$0xf]
    %v266 = vunpack.c.l.b16 %v202
    %v267 = vunpack.c.l.b16 %v203
    %v268 = vunpack.c.l.b16 %v204
    %v269 = vunpack.c.l.b16 %v205
    %v270 = vunpack.c.l.b16 %v206
    %v271 = vunpack.c.l.b16 %v207
    %v272 = vunpack.c.l.b16 %v208
    %v273 = vunpack.c.l.b16 %v209
    %v274 = vunpack.c.l.b16 %v210
    %v275 = vunpack.c.l.b16 %v211
    %v276 = vunpack.c.l.b16 %v212
    %v277 = vunpack.c.l.b16 %v213
    %v278 = vunpack.c.l.b16 %v214
    %v279 = vunpack.c.l.b16 %v215
    %v280 = vunpack.c.l.b16 %v216
    %v281 = vunpack.c.l.b16 %v217
    %v282 = vunpack.c.l.b16 %v218
    %v283 = vunpack.c.l.b16 %v219
    %v284 = vunpack.c.l.b16 %v220
    %v285 = vunpack.c.l.b16 %v221
    %v286 = vunpack.c.l.b16 %v222
    %v287 = vunpack.c.l.b16 %v223
    %v288 = vunpack.c.l.b16 %v224
    %v289 = vunpack.c.l.b16 %v225
    %v290 = vunpack.c.l.b16 %v226
    %v291 = vunpack.c.l.b16 %v227
    %v292 = vunpack.c.l.b16 %v228
    %v293 = vunpack.c.l.b16 %v229
    %v294 = vunpack.c.l.b16 %v230
    %v295 = vunpack.c.l.b16 %v231
    %v296 = vunpack.c.l.b16 %v232
    %v297 = vunpack.c.l.b16 %v233
    %v298 = vpack.c.b16 %v267, %v266
    %v299 = vpack.c.b16 %v269, %v268
    %v300 = vpack.c.b16 %v271, %v270
    %v301 = vpack.c.b16 %v273, %v272
    %v302 = vpack.c.b16 %v275, %v274
    %v303 = vpack.c.b16 %v277, %v276
    %v304 = vpack.c.b16 %v279, %v278
    %v305 = vpack.c.b16 %v281, %v280
    %v306 = vpack.c.b16 %v283, %v282
    %v307 = vpack.c.b16 %v285, %v284
    %v308 = vpack.c.b16 %v287, %v286
    %v309 = vpack.c.b16 %v289, %v288
    %v310 = vpack.c.b16 %v291, %v290
    %v311 = vpack.c.b16 %v293, %v292
    %v312 = vpack.c.b16 %v295, %v294
    %v313 = vpack.c.b16 %v297, %v296
    %330 = vmatprep.subr.bf16.mxu0 0
    %331 = vmatpush1.bf16.msra.mxu0 %v298
    %332 = vmatprep.subr.bf16.mxu0 0
    %333 = vmatpush1.bf16.msra.mxu0 %v299
    %334 = vmatprep.subr.bf16.mxu0 0
    %335 = vmatpush1.bf16.msra.mxu0 %v300
    %336 = vmatprep.subr.bf16.mxu0 0
    %337 = vmatpush1.bf16.msra.mxu0 %v301
    %338 = vmatprep.subr.bf16.mxu0 0
    %339 = vmatpush1.bf16.msra.mxu0 %v302
    %340 = vmatprep.subr.bf16.mxu0 0
    %341 = vmatpush1.bf16.msra.mxu0 %v303
    %342 = vmatprep.subr.bf16.mxu0 0
    %343 = vmatpush1.bf16.msra.mxu0 %v304
    %344 = vmatprep.subr.bf16.mxu0 0
    %345 = vmatpush1.bf16.msra.mxu0 %v305
    %346 = vmatprep.subr.bf16.mxu0 0
    %347 = vmatpush1.bf16.msra.mxu0 %v306
    %348 = vmatprep.subr.bf16.mxu0 0
    %349 = vmatpush1.bf16.msra.mxu0 %v307
    %350 = vmatprep.subr.bf16.mxu0 0
    %351 = vmatpush1.bf16.msra.mxu0 %v308
    %352 = vmatprep.subr.bf16.mxu0 0
    %353 = vmatpush1.bf16.msra.mxu0 %v309
    %354 = vmatprep.subr.bf16.mxu0 0
    %355 = vmatpush1.bf16.msra.mxu0 %v310
    %356 = vmatprep.subr.bf16.mxu0 0
    %357 = vmatpush1.bf16.msra.mxu0 %v311
    %358 = vmatprep.subr.bf16.mxu0 0
    %359 = vmatpush1.bf16.msra.mxu0 %v312
    %360 = vmatprep.subr.bf16.mxu0 0
    %361 = vmatpush1.bf16.msra.mxu0 %v313
    %362 = vmatprep.mubr.bf16.mxu0 %v201
    %363 = vmatmul.mubr.bf16.gmra.mrb[0].mxu0 %v200
    %v364 = vpop.f32.mrb[0].mxu0
    %v365 = vadd.f32 0.0, %v364
    %v366 = vpop.f32.mrb[0].mxu0
    %v367 = vpop.f32.mrb[0].mxu0
    %v368 = vadd.f32 0.0, %v367
    %v369 = vpop.f32.mrb[0].mxu0
    %370 = vdwg.mxu0
    %v371 = vadd.f32 %v198, %v365
    %v372 = vadd.f32 %v199, %v368
    %373 = vst [vmem:[#allocation2] sm:$0xff] %v371
    %374 = vst [vmem:[#allocation2 + $0x8] sm:$0xff] %v372
    // Predicated region
    $region26: #{_mlp_forward_impl.1} parent=1 // pred_check
      _
    $region27: #{_mlp_forward_impl.1} parent=1 // pred_check_branch
      %376 = sbr.rel (0) target = $region29
    $region28: #{_mlp_forward_impl.1} parent=1 // pred_region
      %s378 = ssub.s32 256, 256
      %379 = vsyncadd [#allocation3], %s378
      %s380 = sshll.u32 [#allocation2], 4
      %s381 = int_to_ptr.vmem [resolvable:$true] %s380
      %386 = dma.vmem_to_hbm [thread:$0]  %s381, 256, %s5, [#allocation3], 128, 128, 8
    $region29: #{_mlp_forward_impl.1} parent=1 // pred_fallthru
      _
    // Predicated region
    $region30: #{_mlp_forward_impl.1} parent=1 // pred_check
      _
    $region31: #{_mlp_forward_impl.1} parent=1 // pred_check_branch
      %388 = sbr.rel (0) target = $region33
    $region32: #{_mlp_forward_impl.1} parent=1 // pred_region
      %389 = dma.done [#allocation3], 256
    $region33: #{_mlp_forward_impl.1} parent=1 // pred_fallthru
      _
    %390 = vsyncpa [#allocation3], 1

</llo_original>
